<compile_context>
chip_gen: v6e
topology: v6e:2x2x1
jax: 0.10.0
libtpu: 0.0.40
codegen_flags: <defaults>
</compile_context>

<pallas_src>
import functools

import jax
import jax.numpy as jnp
from jax.experimental import pallas as pl
from jax.experimental.pallas import tpu as pltpu


_LANE = 128


def _round_up(x, m):
    return (x + m - 1) // m * m


def _seq_label_kernel(x_ref, w1_ref, b1_ref, ws_ref, bs_ref, wo_ref, bo_ref,
                      sub_ref, obj_ref):
    # x_ref:  (TM, H)           w1_ref: (H, H2p)       b1_ref: (1, H2p) f32
    # ws_ref/wo_ref: (H2p, T)   bs_ref/bo_ref: (1, T)  f32
    # sub_ref/obj_ref: (TM, T)
    x = x_ref[...]

    # Linear(hidden -> hidden/2) + bias + ReLU.  MXU matmul with f32
    # accumulation; zero-padded H2p columns are ReLU(0 + 0) = 0 and the
    # matching zero rows of ws/wo keep the heads exact.
    h = jnp.dot(x, w1_ref[...], preferred_element_type=jnp.float32) + b1_ref[...]
    h = jnp.maximum(h, 0.0)
    # TODO(synk): training-mode dropout (stochastic mask + 1/(1-p) scale) not
    # implemented; eval-mode dropout is identity, which is what we implement.

    # Two tag heads, each writing straight to its own lane-offset-0 output
    # (no 128-padded fused slab, no unaligned splitting).  Head matmuls run in
    # the compute dtype (bf16 on the fast path) with f32 accumulation.
    h = h.astype(ws_ref.dtype)
    sub_ref[...] = (jnp.dot(h, ws_ref[...], preferred_element_type=jnp.float32)
                    + bs_ref[...]).astype(sub_ref.dtype)
    obj_ref[...] = (jnp.dot(h, wo_ref[...], preferred_element_type=jnp.float32)
                    + bo_ref[...]).astype(obj_ref.dtype)


def prepare_params(w1, b1, ws, b_sub, wo, b_obj, *, compute_dtype=jnp.float32):
    """One-time (init-time) weight preprocessing, hoisted out of the call path.

    Pads hidden/2 up to a 128-lane multiple (zero W1 columns / zero head rows
    keep the math exact) and casts weights to `compute_dtype` (bf16 is
    recommended on v6e/v7x).  Biases stay f32 (bias-add is done in f32).
    Weights are expected pre-transposed to (in, out).
    """
    H, H2 = w1.shape
    H2p = _round_up(H2, _LANE)
    pad_c = H2p - H2
    w1p = jnp.pad(w1, ((0, 0), (0, pad_c))).astype(compute_dtype)
    b1p = jnp.pad(b1.reshape(1, H2), ((0, 0), (0, pad_c))).astype(jnp.float32)
    wsp = jnp.pad(ws, ((0, pad_c), (0, 0))).astype(compute_dtype)
    wop = jnp.pad(wo, ((0, pad_c), (0, 0))).astype(compute_dtype)
    bsp = b_sub.reshape(1, -1).astype(jnp.float32)
    bop = b_obj.reshape(1, -1).astype(jnp.float32)
    return w1p, b1p, wsp, bsp, wop, bop


def _default_row_tile(rows, H, T, c_bytes, o_bytes):
    tile = 1024                                     # amortize ~0.35us/grid step
    # Keep >= 4 grid steps when rows allow so the "parallel" row axis can be
    # sharded across v7x's two TensorCores (no effect on 1-TC v5e/v6e).
    tile = min(tile, _round_up(max(-(-rows // 4), 8), 8))
    # VMEM budget (~16 MiB) for the double-buffered x + sub + obj tiles.
    per_row = 2 * (H * c_bytes + 2 * T * o_bytes)
    tile = min(tile, max(8, (16 * 1024 * 1024 // per_row) // 8 * 8))
    return max(8, min(tile, _round_up(rows, 8)))


@functools.partial(jax.jit, static_argnames=("row_tile", "out_dtype"))
def sequence_label_for_grid(x, w1p, b1p, wsp, bsp, wop, bop, *,
                            row_tile=None, out_dtype=None):
    """x: (bs, seq_len, hidden); params from prepare_params().

    Returns (sub, obj), each (bs, seq_len, tag_size).
    """
    B, S, H = x.shape
    H2p = w1p.shape[1]
    T = wsp.shape[1]
    rows = B * S
    compute_dtype = w1p.dtype
    if out_dtype is None:
        out_dtype = x.dtype

    x2d = x.reshape(rows, H)
    if x2d.dtype != compute_dtype:
        # bf16 fast path: halves the x-tile DMA bytes.  (Ideally the upstream
        # producer already emits bf16 so this cast disappears entirely.)
        x2d = x2d.astype(compute_dtype)

    c_bytes = jnp.dtype(compute_dtype).itemsize
    o_bytes = jnp.dtype(out_dtype).itemsize
    if row_tile is None:
        row_tile = _default_row_tile(rows, H, T, c_bytes, o_bytes)
    row_tile = max(8, _round_up(int(row_tile), 8))

    grid = (pl.cdiv(rows, row_tile),)   # ragged last block -> masked, no x pad

    in_specs = [
        pl.BlockSpec((row_tile, H), lambda i: (i, 0)),   # x row tile
        # Resident weights/biases (constant index_map -> DMA'd once).
        # TODO(synk): on v7x, pipeline_mode=pl.Buffered(1) on these specs would
        # drop the never-used second buffer; kept default-buffered here for
        # compatibility and budgeted for (2x) in vmem_limit_bytes below.
        pl.BlockSpec((H, H2p), lambda i: (0, 0)),        # W1
        pl.BlockSpec((1, H2p), lambda i: (0, 0)),        # b1
        pl.BlockSpec((H2p, T), lambda i: (0, 0)),        # W_sub
        pl.BlockSpec((1, T), lambda i: (0, 0)),          # b_sub
        pl.BlockSpec((H2p, T), lambda i: (0, 0)),        # W_obj
        pl.BlockSpec((1, T), lambda i: (0, 0)),          # b_obj
    ]
    out_specs = [
        pl.BlockSpec((row_tile, T), lambda i: (i, 0)),   # sub
        pl.BlockSpec((row_tile, T), lambda i: (i, 0)),   # obj
    ]

    # Explicit VMEM budget: double-buffered activation tiles + (double-
    # buffered) resident weights, 2x headroom, floored at v5e's 16 MiB default
    # scoped limit and capped at v7x's 64 MiB physical VMEM.
    # TODO(synk): for very large hidden sizes, add a K grid axis over H with a
    # VMEM f32 accumulator instead of keeping W1 fully resident.
    act_bytes = 2 * row_tile * (H * c_bytes + 2 * T * o_bytes)
    wgt_bytes = 2 * ((H * H2p + 2 * H2p * T) * c_bytes + (H2p + 2 * T) * 4)
    vmem_limit = int(min(64 << 20, max(2 * (act_bytes + wgt_bytes), 16 << 20)))

    sub2d, obj2d = pl.pallas_call(
        _seq_label_kernel,
        out_shape=[jax.ShapeDtypeStruct((rows, T), out_dtype),
                   jax.ShapeDtypeStruct((rows, T), out_dtype)],
        grid_spec=pltpu.PrefetchScalarGridSpec(
            num_scalar_prefetch=0,
            grid=grid,
            in_specs=in_specs,
            out_specs=out_specs,
        ),
        compiler_params=pltpu.CompilerParams(
            dimension_semantics=("parallel",),
            vmem_limit_bytes=vmem_limit),
    )(x2d, w1p, b1p, wsp, bsp, wop, bop)

    return sub2d.reshape(B, S, T), obj2d.reshape(B, S, T)


def _init_linear(key, fan_in, fan_out, dtype=jnp.float32):
    """PyTorch nn.Linear default init: U(-1/sqrt(fan_in), 1/sqrt(fan_in)).
    Returns (W_transposed [in, out], b [1, out])."""
    kw, kb = jax.random.split(key)
    bound = 1.0 / jnp.sqrt(jnp.array(fan_in, dtype))
    w = jax.random.uniform(kw, (fan_in, fan_out), dtype, -bound, bound)
    b = jax.random.uniform(kb, (1, fan_out), dtype, -bound, bound)
    return w, b


if __name__ == "__main__":
    batch, seq_len, hidden, tag_size = 2, 8, 32, 8
    hidden2 = hidden // 2

    key = jax.random.PRNGKey(0)
    kx, k1, k2, k3, kx2 = jax.random.split(key, 5)

    x = jax.random.normal(kx, (batch, seq_len, hidden), jnp.float32)
    w1, b1 = _init_linear(k1, hidden, hidden2)        # self.linear
    ws, b_sub = _init_linear(k2, hidden2, tag_size)   # hidden2tag_sub
    wo, b_obj = _init_linear(k3, hidden2, tag_size)   # hidden2tag_obj

    def reference(xin):
        h = jnp.maximum(xin @ w1 + b1[0], 0.0)        # eval-mode dropout = id
        return h @ ws + b_sub[0], h @ wo + b_obj[0]

    # f32 path.
    params = prepare_params(w1, b1, ws, b_sub, wo, b_obj)   # init-time, once
    sub_out, obj_out = sequence_label_for_grid(x, *params)
    jax.block_until_ready((sub_out, obj_out))
    sub_ref, obj_ref = reference(x)
    assert sub_out.shape == (batch, seq_len, tag_size)
    assert obj_out.shape == (batch, seq_len, tag_size)
    assert jnp.allclose(sub_out, sub_ref, atol=1e-5)
    assert jnp.allclose(obj_out, obj_ref, atol=1e-5)

    # Ragged rows (rows % row_tile != 0) -> exercises the masked last block.
    x_odd = jax.random.normal(kx2, (3, 5, hidden), jnp.float32)
    sub_o, obj_o = sequence_label_for_grid(x_odd, *params)
    jax.block_until_ready((sub_o, obj_o))
    sub_o_ref, obj_o_ref = reference(x_odd)
    assert jnp.allclose(sub_o, sub_o_ref, atol=1e-5)
    assert jnp.allclose(obj_o, obj_o_ref, atol=1e-5)

    # bf16 compute path (halved HBM traffic, native bf16 MXU on v6e/v7x).
    params_bf16 = prepare_params(w1, b1, ws, b_sub, wo, b_obj,
                                 compute_dtype=jnp.bfloat16)
    sub_b, obj_b = sequence_label_for_grid(x, *params_bf16)
    jax.block_until_ready((sub_b, obj_b))
    assert jnp.allclose(sub_b, sub_ref, atol=5e-2, rtol=5e-2)
    assert jnp.allclose(obj_b, obj_ref, atol=5e-2, rtol=5e-2)

    print("KERNEL_OK")
</pallas_src>

<mosaic_0001>
module attributes {stable_mosaic.version = 11 : i64} {
  func.func @_seq_label_kernel(%arg0: i32, %arg1: memref<8x32xf32, #tpu.memory_space<vmem>>, %arg2: memref<32x128xf32, #tpu.memory_space<vmem>>, %arg3: memref<1x128xf32, #tpu.memory_space<vmem>>, %arg4: memref<128x8xf32, #tpu.memory_space<vmem>>, %arg5: memref<1x8xf32, #tpu.memory_space<vmem>>, %arg6: memref<128x8xf32, #tpu.memory_space<vmem>>, %arg7: memref<1x8xf32, #tpu.memory_space<vmem>>, %arg8: memref<8x8xf32, #tpu.memory_space<vmem>>, %arg9: memref<8x8xf32, #tpu.memory_space<vmem>>) attributes {dimension_semantics = [#tpu.dimension_semantics<parallel>], iteration_bounds = array<i64: 2>, scalar_prefetch = 0 : i64, scratch_operands = 0 : i64, tpu.core_type = #tpu.core_type<tc>, window_params = [{transform_indices = @transform_0, window_bounds = array<i64: 8, 32>}, {pipeline_mode = #tpu.pipeline_mode<synchronous>, transform_indices = @transform_1, window_bounds = array<i64: 32, 128>}, {pipeline_mode = #tpu.pipeline_mode<synchronous>, transform_indices = @transform_2, window_bounds = array<i64: 1, 128>}, {pipeline_mode = #tpu.pipeline_mode<synchronous>, transform_indices = @transform_3, window_bounds = array<i64: 128, 8>}, {pipeline_mode = #tpu.pipeline_mode<synchronous>, transform_indices = @transform_4, window_bounds = array<i64: 1, 8>}, {pipeline_mode = #tpu.pipeline_mode<synchronous>, transform_indices = @transform_5, window_bounds = array<i64: 128, 8>}, {pipeline_mode = #tpu.pipeline_mode<synchronous>, transform_indices = @transform_6, window_bounds = array<i64: 1, 8>}, {transform_indices = @transform_7, window_bounds = array<i64: 8, 8>}, {transform_indices = @transform_8, window_bounds = array<i64: 8, 8>}]} {
    %c0 = arith.constant 0 : index
    %c0_0 = arith.constant 0 : index
    %0 = vector.load %arg1[%c0, %c0_0] : memref<8x32xf32, #tpu.memory_space<vmem>>, vector<8x32xf32>
    %c0_1 = arith.constant 0 : index
    %c0_2 = arith.constant 0 : index
    %1 = vector.load %arg2[%c0_1, %c0_2] : memref<32x128xf32, #tpu.memory_space<vmem>>, vector<32x128xf32>
    %cst = arith.constant dense<0.000000e+00> : vector<8x128xf32>
    %2 = tpu.matmul %0, %1, %cst {dimension_numbers = #tpu.dot_dimension_numbers<[1], [0], [0], [1], [0, 0, 1, 1], [], []>} : vector<8x32xf32>, vector<32x128xf32>, vector<8x128xf32> -> vector<8x128xf32>
    %c0_3 = arith.constant 0 : index
    %c0_4 = arith.constant 0 : index
    %3 = vector.load %arg3[%c0_3, %c0_4] : memref<1x128xf32, #tpu.memory_space<vmem>>, vector<1x128xf32>
    %4 = vector.broadcast %3 : vector<1x128xf32> to vector<8x128xf32>
    %5 = arith.addf %2, %4 : vector<8x128xf32>
    %cst_5 = arith.constant 0.000000e+00 : f32
    %6 = vector.broadcast %cst_5 : f32 to vector<8x128xf32>
    %7 = arith.maximumf %5, %6 : vector<8x128xf32>
    %c0_6 = arith.constant 0 : index
    %c0_7 = arith.constant 0 : index
    %8 = vector.load %arg4[%c0_6, %c0_7] : memref<128x8xf32, #tpu.memory_space<vmem>>, vector<128x8xf32>
    %cst_8 = arith.constant dense<0.000000e+00> : vector<8x8xf32>
    %9 = tpu.matmul %7, %8, %cst_8 {dimension_numbers = #tpu.dot_dimension_numbers<[1], [0], [0], [1], [0, 0, 1, 1], [], []>} : vector<8x128xf32>, vector<128x8xf32>, vector<8x8xf32> -> vector<8x8xf32>
    %c0_9 = arith.constant 0 : index
    %c0_10 = arith.constant 0 : index
    %10 = vector.load %arg5[%c0_9, %c0_10] : memref<1x8xf32, #tpu.memory_space<vmem>>, vector<1x8xf32>
    %11 = vector.broadcast %10 : vector<1x8xf32> to vector<8x8xf32>
    %12 = arith.addf %9, %11 : vector<8x8xf32>
    %c0_11 = arith.constant 0 : index
    %c0_12 = arith.constant 0 : index
    %13 = vector.load %arg8[%c0_11, %c0_12] : memref<8x8xf32, #tpu.memory_space<vmem>>, vector<8x8xf32>
    tpu.vector_store %arg8[%c0_11, %c0_12], %12 {strides = array<i32>} : memref<8x8xf32, #tpu.memory_space<vmem>>, vector<8x8xf32>,
    %c0_13 = arith.constant 0 : index
    %c0_14 = arith.constant 0 : index
    %14 = vector.load %arg6[%c0_13, %c0_14] : memref<128x8xf32, #tpu.memory_space<vmem>>, vector<128x8xf32>
    %cst_15 = arith.constant dense<0.000000e+00> : vector<8x8xf32>
    %15 = tpu.matmul %7, %14, %cst_15 {dimension_numbers = #tpu.dot_dimension_numbers<[1], [0], [0], [1], [0, 0, 1, 1], [], []>} : vector<8x128xf32>, vector<128x8xf32>, vector<8x8xf32> -> vector<8x8xf32>
    %c0_16 = arith.constant 0 : index
    %c0_17 = arith.constant 0 : index
    %16 = vector.load %arg7[%c0_16, %c0_17] : memref<1x8xf32, #tpu.memory_space<vmem>>, vector<1x8xf32>
    %17 = vector.broadcast %16 : vector<1x8xf32> to vector<8x8xf32>
    %18 = arith.addf %15, %17 : vector<8x8xf32>
    %c0_18 = arith.constant 0 : index
    %c0_19 = arith.constant 0 : index
    %19 = vector.load %arg9[%c0_18, %c0_19] : memref<8x8xf32, #tpu.memory_space<vmem>>, vector<8x8xf32>
    tpu.vector_store %arg9[%c0_18, %c0_19], %18 {strides = array<i32>} : memref<8x8xf32, #tpu.memory_space<vmem>>, vector<8x8xf32>,
    return
  }
  func.func @transform_0(%arg0: i32) -> (i32, i32) {
    %c0_i32 = arith.constant 0 : i32
    %c0_i32_0 = arith.constant 0 : i32
    return %arg0, %c0_i32 : i32, i32
  }
  func.func @transform_1(%arg0: i32) -> (i32, i32) {
    %c0_i32 = arith.constant 0 : i32
    %c0_i32_0 = arith.constant 0 : i32
    %c0_i32_1 = arith.constant 0 : i32
    return %c0_i32, %c0_i32_0 : i32, i32
  }
  func.func @transform_2(%arg0: i32) -> (i32, i32) {
    %c0_i32 = arith.constant 0 : i32
    %c0_i32_0 = arith.constant 0 : i32
    %c0_i32_1 = arith.constant 0 : i32
    return %c0_i32, %c0_i32_0 : i32, i32
  }
  func.func @transform_3(%arg0: i32) -> (i32, i32) {
    %c0_i32 = arith.constant 0 : i32
    %c0_i32_0 = arith.constant 0 : i32
    %c0_i32_1 = arith.constant 0 : i32
    return %c0_i32, %c0_i32_0 : i32, i32
  }
  func.func @transform_4(%arg0: i32) -> (i32, i32) {
    %c0_i32 = arith.constant 0 : i32
    %c0_i32_0 = arith.constant 0 : i32
    %c0_i32_1 = arith.constant 0 : i32
    return %c0_i32, %c0_i32_0 : i32, i32
  }
  func.func @transform_5(%arg0: i32) -> (i32, i32) {
    %c0_i32 = arith.constant 0 : i32
    %c0_i32_0 = arith.constant 0 : i32
    %c0_i32_1 = arith.constant 0 : i32
    return %c0_i32, %c0_i32_0 : i32, i32
  }
  func.func @transform_6(%arg0: i32) -> (i32, i32) {
    %c0_i32 = arith.constant 0 : i32
    %c0_i32_0 = arith.constant 0 : i32
    %c0_i32_1 = arith.constant 0 : i32
    return %c0_i32, %c0_i32_0 : i32, i32
  }
  func.func @transform_7(%arg0: i32) -> (i32, i32) {
    %c0_i32 = arith.constant 0 : i32
    %c0_i32_0 = arith.constant 0 : i32
    return %arg0, %c0_i32 : i32, i32
  }
  func.func @transform_8(%arg0: i32) -> (i32, i32) {
    %c0_i32 = arith.constant 0 : i32
    %c0_i32_0 = arith.constant 0 : i32
    return %arg0, %c0_i32 : i32, i32
  }
}

</mosaic_0001>

<llo_original>
// kernel: sequence_label_for_grid.1
$region0: #{sequence_label_for_grid.1}
  #allocation0 [shape = 'u32[]', space=smem, size = 0x4, offset = 0x4, fixed_abs, tag = 'smem constant byte address 0x4 - core index']
  #allocation1 [shape = 'u32[144,128]{1,0:T(1,128)}', space=vmem, size = 0x12000, scoped, tag = 'internal scratch']
  %s0 = inlined_call_operand.vmem [shape: f32[16,32], index: 0, kind: input, shape index: {}]
  %s1 = inlined_call_operand.vmem [shape: f32[32,128], index: 1, kind: input, shape index: {}]
  %s2 = inlined_call_operand.vmem [shape: f32[1,128], index: 2, kind: input, shape index: {}]
  %s3 = inlined_call_operand.vmem [shape: f32[128,8], index: 3, kind: input, shape index: {}]
  %s4 = inlined_call_operand.vmem [shape: f32[1,8], index: 4, kind: input, shape index: {}]
  %s5 = inlined_call_operand.vmem [shape: f32[128,8], index: 5, kind: input, shape index: {}]
  %s6 = inlined_call_operand.vmem [shape: f32[1,8], index: 6, kind: input, shape index: {}]
  %s7 = inlined_call_operand.hbm [shape: f32[16,8], index: 7, kind: output, shape index: {0}]
  %s8 = inlined_call_operand.hbm [shape: f32[16,8], index: 8, kind: output, shape index: {1}]
  %9 = xla_tuple %s7, %s8
  %s10 = sld [smem:[#allocation0]]
  $region69: #{sequence_label_for_grid.1} parent=0
    _
  %s12 = ssub.s32 1, %s10
  %s13 = scalar_select 0, %s12, %s10
  $region1: #{sequence_label_for_grid.1} parent=0
    #allocation2 [shape = 'u8[8192]{0}', space=vmem, size = 0x2000, scoped, tag = 'output window, operand 0']
    #allocation3 [shape = 's32[2]{0}', space=sflag, size = 0x8, scoped, tag = 'scoped memory for sequence_label_for_grid.1']
    #allocation4 [shape = 'u8[8192]{0}', space=vmem, size = 0x2000, scoped, tag = 'output window, operand 1']
    #allocation5 [shape = 's32[2]{0}', space=sflag, size = 0x8, scoped, tag = 'scoped memory for sequence_label_for_grid.1']
    %14 = vsyncpa [#allocation3], 0
    %s15 = scalar_lea.sflag [#allocation3], 1
    %16 = vsyncpa %s15, 0
    %17 = vsyncpa [#allocation5], 0
    %s18 = scalar_lea.sflag [#allocation5], 1
    %19 = vsyncpa %s18, 0
    loop: start=0, step=1, limit=4
    $region2: #{sequence_label_for_grid.1} parent=1 // loop_pre_header
      _
    $region3: #{sequence_label_for_grid.1} parent=1 // loop_header
      %s21 = sphi 0, %s25
      %p22 = scmp.ge.s32.totalorder %s21, 4
      %s31 = sphi 0, %s33
      %s34 = sphi 0, %s31
      %s35 = sphi 0, %s34
      %s51 = sphi 0, %s35
      %s55 = sphi 0, %s55
      %s57 = sphi 0, %s55
      %s58 = sphi 0, %s57
      %s72 = sphi 0, %s58
      %s76 = sphi 0, %s76
      %s78 = sphi 0, %s76
      %s79 = sphi 0, %s78
      %s93 = sphi 0, %s79
      %s97 = sphi 0, %s97
      %s99 = sphi 0, %s97
      %s100 = sphi 0, %s99
      %s114 = sphi 0, %s100
      %s118 = sphi 0, %s118
      %s120 = sphi 0, %s118
      %s121 = sphi 0, %s120
      %s135 = sphi 0, %s121
      %s139 = sphi 0, %s139
      %s141 = sphi 0, %s139
      %s142 = sphi 0, %s141
      %s156 = sphi 0, %s142
      %s160 = sphi 0, %s160
      %s162 = sphi 0, %s160
      %s163 = sphi 0, %s162
      %s177 = sphi 0, %s163
      %s183 = sphi 0, %s185
      %s186 = sphi 0, %s183
      %s187 = sphi 0, %s186
      %s203 = sphi 0, %s187
      %s209 = sphi 0, %s211
      %s212 = sphi 0, %s209
      %s213 = sphi 0, %s212
      %s229 = sphi 0, %s213
    $region4: #{sequence_label_for_grid.1} parent=1 // loop_header_branch
      %24 = sbr.rel (%p22) target = $region8
    $region5: #{sequence_label_for_grid.1} parent=1 // loop_body
      %s26 = ssub.s32 %s21, 1
      %s27 = ssub.s32 %s21, 2
      %s28 = sadd.s32 %s21, 1
      %s29 = ssub.s32 %s21, %s28
      %p30 = scmp.eq.s32.totalorder %s29, 0
      %s32 = sadd.s32 %s31, 1
      %s33 = scalar_select %p30, %s31, %s32
      %p36 = pneg %p30
      %p37 = scmp.eq.s32.totalorder %s21, 1
      %p38 = por %p36, %p37
      %p39 = scmp.ne.s32.totalorder %s31, %s34
      %p40 = scmp.eq.s32.totalorder %s21, 0
      %p41 = por %p39, %p40
      %p42 = scmp.ne.s32.totalorder %s31, %s34
      %p43 = scmp.eq.s32.totalorder %s26, 1
      %p44 = por %p42, %p43
      %p45 = scmp.ne.s32.totalorder %s34, %s35
      %p46 = scmp.eq.s32.totalorder %s26, 0
      %p47 = por %p45, %p46
      %p48 = scmp.ne.s32.totalorder %s34, %s35
      %p49 = scmp.eq.s32.totalorder %s27, 1
      %p50 = por %p48, %p49
      %p52 = scmp.ne.s32.totalorder %s35, %s51
      %p53 = scmp.eq.s32.totalorder %s27, 0
      %p54 = por %p52, %p53
      %s56 = sadd.s32 %s55, 1
      %p59 = scmp.eq.s32.totalorder %s21, 1
      %p60 = scmp.ne.s32.totalorder %s55, %s57
      %p61 = scmp.eq.s32.totalorder %s21, 0
      %p62 = por %p60, %p61
      %p63 = scmp.ne.s32.totalorder %s55, %s57
      %p64 = scmp.eq.s32.totalorder %s26, 1
      %p65 = por %p63, %p64
      %p66 = scmp.ne.s32.totalorder %s57, %s58
      %p67 = scmp.eq.s32.totalorder %s26, 0
      %p68 = por %p66, %p67
      %p69 = scmp.ne.s32.totalorder %s57, %s58
      %p70 = scmp.eq.s32.totalorder %s27, 1
      %p71 = por %p69, %p70
      %p73 = scmp.ne.s32.totalorder %s58, %s72
      %p74 = scmp.eq.s32.totalorder %s27, 0
      %p75 = por %p73, %p74
      %s77 = sadd.s32 %s76, 1
      %p80 = scmp.eq.s32.totalorder %s21, 1
      %p81 = scmp.ne.s32.totalorder %s76, %s78
      %p82 = scmp.eq.s32.totalorder %s21, 0
      %p83 = por %p81, %p82
      %p84 = scmp.ne.s32.totalorder %s76, %s78
      %p85 = scmp.eq.s32.totalorder %s26, 1
      %p86 = por %p84, %p85
      %p87 = scmp.ne.s32.totalorder %s78, %s79
      %p88 = scmp.eq.s32.totalorder %s26, 0
      %p89 = por %p87, %p88
      %p90 = scmp.ne.s32.totalorder %s78, %s79
      %p91 = scmp.eq.s32.totalorder %s27, 1
      %p92 = por %p90, %p91
      %p94 = scmp.ne.s32.totalorder %s79, %s93
      %p95 = scmp.eq.s32.totalorder %s27, 0
      %p96 = por %p94, %p95
      %s98 = sadd.s32 %s97, 1
      %p101 = scmp.eq.s32.totalorder %s21, 1
      %p102 = scmp.ne.s32.totalorder %s97, %s99
      %p103 = scmp.eq.s32.totalorder %s21, 0
      %p104 = por %p102, %p103
      %p105 = scmp.ne.s32.totalorder %s97, %s99
      %p106 = scmp.eq.s32.totalorder %s26, 1
      %p107 = por %p105, %p106
      %p108 = scmp.ne.s32.totalorder %s99, %s100
      %p109 = scmp.eq.s32.totalorder %s26, 0
      %p110 = por %p108, %p109
      %p111 = scmp.ne.s32.totalorder %s99, %s100
      %p112 = scmp.eq.s32.totalorder %s27, 1
      %p113 = por %p111, %p112
      %p115 = scmp.ne.s32.totalorder %s100, %s114
      %p116 = scmp.eq.s32.totalorder %s27, 0
      %p117 = por %p115, %p116
      %s119 = sadd.s32 %s118, 1
      %p122 = scmp.eq.s32.totalorder %s21, 1
      %p123 = scmp.ne.s32.totalorder %s118, %s120
      %p124 = scmp.eq.s32.totalorder %s21, 0
      %p125 = por %p123, %p124
      %p126 = scmp.ne.s32.totalorder %s118, %s120
      %p127 = scmp.eq.s32.totalorder %s26, 1
      %p128 = por %p126, %p127
      %p129 = scmp.ne.s32.totalorder %s120, %s121
      %p130 = scmp.eq.s32.totalorder %s26, 0
      %p131 = por %p129, %p130
      %p132 = scmp.ne.s32.totalorder %s120, %s121
      %p133 = scmp.eq.s32.totalorder %s27, 1
      %p134 = por %p132, %p133
      %p136 = scmp.ne.s32.totalorder %s121, %s135
      %p137 = scmp.eq.s32.totalorder %s27, 0
      %p138 = por %p136, %p137
      %s140 = sadd.s32 %s139, 1
      %p143 = scmp.eq.s32.totalorder %s21, 1
      %p144 = scmp.ne.s32.totalorder %s139, %s141
      %p145 = scmp.eq.s32.totalorder %s21, 0
      %p146 = por %p144, %p145
      %p147 = scmp.ne.s32.totalorder %s139, %s141
      %p148 = scmp.eq.s32.totalorder %s26, 1
      %p149 = por %p147, %p148
      %p150 = scmp.ne.s32.totalorder %s141, %s142
      %p151 = scmp.eq.s32.totalorder %s26, 0
      %p152 = por %p150, %p151
      %p153 = scmp.ne.s32.totalorder %s141, %s142
      %p154 = scmp.eq.s32.totalorder %s27, 1
      %p155 = por %p153, %p154
      %p157 = scmp.ne.s32.totalorder %s142, %s156
      %p158 = scmp.eq.s32.totalorder %s27, 0
      %p159 = por %p157, %p158
      %s161 = sadd.s32 %s160, 1
      %p164 = scmp.eq.s32.totalorder %s21, 1
      %p165 = scmp.ne.s32.totalorder %s160, %s162
      %p166 = scmp.eq.s32.totalorder %s21, 0
      %p167 = por %p165, %p166
      %p168 = scmp.ne.s32.totalorder %s160, %s162
      %p169 = scmp.eq.s32.totalorder %s26, 1
      %p170 = por %p168, %p169
      %p171 = scmp.ne.s32.totalorder %s162, %s163
      %p172 = scmp.eq.s32.totalorder %s26, 0
      %p173 = por %p171, %p172
      %p174 = scmp.ne.s32.totalorder %s162, %s163
      %p175 = scmp.eq.s32.totalorder %s27, 1
      %p176 = por %p174, %p175
      %p178 = scmp.ne.s32.totalorder %s163, %s177
      %p179 = scmp.eq.s32.totalorder %s27, 0
      %p180 = por %p178, %p179
      %s181 = ssub.s32 %s21, %s28
      %p182 = scmp.eq.s32.totalorder %s181, 0
      %s184 = sadd.s32 %s183, 1
      %s185 = scalar_select %p182, %s183, %s184
      %p188 = pneg %p182
      %p189 = scmp.eq.s32.totalorder %s21, 1
      %p190 = por %p188, %p189
      %p191 = scmp.ne.s32.totalorder %s183, %s186
      %p192 = scmp.eq.s32.totalorder %s21, 0
      %p193 = por %p191, %p192
      %p194 = scmp.ne.s32.totalorder %s183, %s186
      %p195 = scmp.eq.s32.totalorder %s26, 1
      %p196 = por %p194, %p195
      %p197 = scmp.ne.s32.totalorder %s186, %s187
      %p198 = scmp.eq.s32.totalorder %s26, 0
      %p199 = por %p197, %p198
      %p200 = scmp.ne.s32.totalorder %s186, %s187
      %p201 = scmp.eq.s32.totalorder %s27, 1
      %p202 = por %p200, %p201
      %p204 = scmp.ne.s32.totalorder %s187, %s203
      %p205 = scmp.eq.s32.totalorder %s27, 0
      %p206 = por %p204, %p205
      %s207 = ssub.s32 %s21, %s28
      %p208 = scmp.eq.s32.totalorder %s207, 0
      %s210 = sadd.s32 %s209, 1
      %s211 = scalar_select %p208, %s209, %s210
      %p214 = pneg %p208
      %p215 = scmp.eq.s32.totalorder %s21, 1
      %p216 = por %p214, %p215
      %p217 = scmp.ne.s32.totalorder %s209, %s212
      %p218 = scmp.eq.s32.totalorder %s21, 0
      %p219 = por %p217, %p218
      %p220 = scmp.ne.s32.totalorder %s209, %s212
      %p221 = scmp.eq.s32.totalorder %s26, 1
      %p222 = por %p220, %p221
      %p223 = scmp.ne.s32.totalorder %s212, %s213
      %p224 = scmp.eq.s32.totalorder %s26, 0
      %p225 = por %p223, %p224
      %p226 = scmp.ne.s32.totalorder %s212, %s213
      %p227 = scmp.eq.s32.totalorder %s27, 1
      %p228 = por %p226, %p227
      %p230 = scmp.ne.s32.totalorder %s213, %s229
      %p231 = scmp.eq.s32.totalorder %s27, 0
      %p232 = por %p230, %p231
      %p233 = scmp.le.s32.totalorder 1, %s21
      %p234 = scmp.lt.s32.totalorder %s21, 3
      %p235 = pnand %p233, %p234
      %p236 = pneg %p235
      // Predicated region
      $region9: #{sequence_label_for_grid.1} parent=5 // pred_check
        _
      $region10: #{sequence_label_for_grid.1} parent=5 // pred_check_branch
        %238 = sbr.rel (%p235) target = $region12
      $region11: #{sequence_label_for_grid.1} parent=5 // pred_region
        %s239 = ssub.s32 %s21, 1
        // Predicated region
        $region13: #{sequence_label_for_grid.1} parent=11 // pred_check
          %p240 = pneg %p68
        $region14: #{sequence_label_for_grid.1} parent=11 // pred_check_branch
          %242 = sbr.rel (%p240) target = $region16
        $region15: #{sequence_label_for_grid.1} parent=11 // pred_region
          _
        $region16: #{sequence_label_for_grid.1} parent=11 // pred_fallthru
          _
        // Predicated region
        $region17: #{sequence_label_for_grid.1} parent=11 // pred_check
          %p243 = pneg %p89
        $region18: #{sequence_label_for_grid.1} parent=11 // pred_check_branch
          %245 = sbr.rel (%p243) target = $region20
        $region19: #{sequence_label_for_grid.1} parent=11 // pred_region
          _
        $region20: #{sequence_label_for_grid.1} parent=11 // pred_fallthru
          _
        // Predicated region
        $region21: #{sequence_label_for_grid.1} parent=11 // pred_check
          %p246 = pneg %p110
        $region22: #{sequence_label_for_grid.1} parent=11 // pred_check_branch
          %248 = sbr.rel (%p246) target = $region24
        $region23: #{sequence_label_for_grid.1} parent=11 // pred_region
          _
        $region24: #{sequence_label_for_grid.1} parent=11 // pred_fallthru
          _
        // Predicated region
        $region25: #{sequence_label_for_grid.1} parent=11 // pred_check
          %p249 = pneg %p131
        $region26: #{sequence_label_for_grid.1} parent=11 // pred_check_branch
          %251 = sbr.rel (%p249) target = $region28
        $region27: #{sequence_label_for_grid.1} parent=11 // pred_region
          _
        $region28: #{sequence_label_for_grid.1} parent=11 // pred_fallthru
          _
        // Predicated region
        $region29: #{sequence_label_for_grid.1} parent=11 // pred_check
          %p252 = pneg %p152
        $region30: #{sequence_label_for_grid.1} parent=11 // pred_check_branch
          %254 = sbr.rel (%p252) target = $region32
        $region31: #{sequence_label_for_grid.1} parent=11 // pred_region
          _
        $region32: #{sequence_label_for_grid.1} parent=11 // pred_fallthru
          _
        // Predicated region
        $region33: #{sequence_label_for_grid.1} parent=11 // pred_check
          %p255 = pneg %p173
        $region34: #{sequence_label_for_grid.1} parent=11 // pred_check_branch
          %257 = sbr.rel (%p255) target = $region36
        $region35: #{sequence_label_for_grid.1} parent=11 // pred_region
          _
        $region36: #{sequence_label_for_grid.1} parent=11 // pred_fallthru
          _
      $region12: #{sequence_label_for_grid.1} parent=5 // pred_fallthru
        _
      %p258 = scmp.lt.s32.totalorder %s21, 2
      // Predicated region
      $region37: #{sequence_label_for_grid.1} parent=5 // pred_check
        %p259 = pneg %p258
      $region38: #{sequence_label_for_grid.1} parent=5 // pred_check_branch
        %261 = sbr.rel (%p259) target = $region40
      $region39: #{sequence_label_for_grid.1} parent=5 // pred_region
        // Predicated region
        $region41: #{sequence_label_for_grid.1} parent=39 // pred_check
          %p262 = pneg %p41
        $region42: #{sequence_label_for_grid.1} parent=39 // pred_check_branch
          %264 = sbr.rel (%p262) target = $region44
        $region43: #{sequence_label_for_grid.1} parent=39 // pred_region
          %p265 = scmp.lt.s32.totalorder %s21, 1
          %s266 = scalar_select %p265, %s21, 1
          %s267 = smul.addr %s266, 8
          %s268 = scalar_lea.vmem %s0, %s267
        $region44: #{sequence_label_for_grid.1} parent=39 // pred_fallthru
          _
      $region40: #{sequence_label_for_grid.1} parent=5 // pred_fallthru
        _
      %p269 = scmp.le.s32.totalorder 1, %s21
      %p270 = scmp.lt.s32.totalorder %s21, 3
      %p271 = pnand %p269, %p270
      %p272 = pneg %p271
      // Predicated region
      $region45: #{sequence_label_for_grid.1} parent=5 // pred_check
        _
      $region46: #{sequence_label_for_grid.1} parent=5 // pred_check_branch
        %274 = sbr.rel (%p271) target = $region48
      $region47: #{sequence_label_for_grid.1} parent=5 // pred_region
        %s275 = ssub.s32 %s21, 1
        %p276 = scmp.lt.s32.totalorder %s26, 1
        %s277 = scalar_select %p276, %s26, 1
        %s278 = smul.addr %s277, 8
        %s279 = scalar_lea.vmem %s0, %s278
        %p280 = pneg %p47
        %p281 = pneg %p44
        %p282 = pneg %p68
        %p283 = pneg %p65
        %p284 = pneg %p89
        %p285 = pneg %p86
        %p286 = pneg %p110
        %p287 = pneg %p107
        %p288 = pneg %p131
        %p289 = pneg %p128
        %p290 = pneg %p152
        %p291 = pneg %p149
        %p292 = pneg %p173
        %p293 = pneg %p170
        %p294 = pneg %p199
        %p295 = pneg %p196
        %s296 = sand.u32 %s186, 1
        %s297 = scalar_lea.sflag [#allocation3], %s296
        %s298 = sand.u32 %s186, 1
        %s299 = smul.addr %s298, 8
        %s300 = scalar_lea.vmem [#allocation2], %s299
        %p301 = pneg %p225
        %p302 = pneg %p222
        %s303 = sand.u32 %s212, 1
        %s304 = scalar_lea.sflag [#allocation5], %s303
        %s305 = sand.u32 %s212, 1
        %s306 = smul.addr %s305, 8
        %s307 = scalar_lea.vmem [#allocation4], %s306
        %p308 = scmp.lt.s32.totalorder %s26, 1
        %s309 = scalar_select %p308, %s26, 1
        %s310 = smul.addr %s309, 8
        %s311 = scalar_lea.vmem %s0, %s310
        %v312 = vld [vmem:[%s311] sm:$0xff]
        %v313 = vld [vmem:[%s1] sm:$0xff]
        %v314 = vld [vmem:[%s1 + $0x8] sm:$0xff]
        %v315 = vld [vmem:[%s1 + $0x10] sm:$0xff]
        %v316 = vld [vmem:[%s1 + $0x18] sm:$0xff]
        %v317 = vld [vmem:[%s2] sm:$0x1]
        %v319 = vlaneseq
        %v320 = vshrl.u32 %v319, 7
        %v321 = vsub.s32 0, %v320
        %v322 = vrot.slane %v317, %v321
        %vm324 = vcmask 261120
        %v326 = vsel %vm324, %v312, 0
        %328 = vmatprep.subr.mxu0 0.0
        %329 = vmatpush1.msra.mxu0 0.0
        %330 = vmatprep.subr.mxu0 0.0
        %331 = vmatpush1.msra.mxu0 0.0
        %332 = vmatprep.subr.mxu0 0.0
        %333 = vmatpush1.msra.mxu0 0.0
        %334 = vmatprep.subr.mxu0 0.0
        %335 = vmatpush1.msra.mxu0 0.0
        %336 = vmatprep.subr.mxu0 0.0
        %337 = vmatpush1.msra.mxu0 0.0
        %338 = vmatprep.subr.mxu0 0.0
        %339 = vmatpush1.msra.mxu0 0.0
        %340 = vmatprep.subr.mxu0 0.0
        %341 = vmatpush1.msra.mxu0 0.0
        %342 = vmatprep.subr.mxu0 0.0
        %343 = vmatpush1.msra.mxu0 0.0
        %344 = vmatprep.subr.mxu0 0.0
        %345 = vmatpush1.msra.mxu0 0.0
        %346 = vmatprep.subr.mxu0 0.0
        %347 = vmatpush1.msra.mxu0 0.0
        %348 = vmatprep.subr.mxu0 0.0
        %349 = vmatpush1.msra.mxu0 0.0
        %350 = vmatprep.subr.mxu0 0.0
        %351 = vmatpush1.msra.mxu0 0.0
        %352 = vmatprep.subr.mxu0 0.0
        %353 = vmatpush1.msra.mxu0 %v316
        %354 = vmatprep.subr.mxu0 0.0
        %355 = vmatpush1.msra.mxu0 %v315
        %356 = vmatprep.subr.mxu0 0.0
        %357 = vmatpush1.msra.mxu0 %v314
        %358 = vmatprep.subr.mxu0 0.0
        %359 = vmatpush1.msra.mxu0 %v313
        %360 = vmatprep.subr.mxu0 0.0
        %361 = vmatpush2.msra.mxu0 0.0
        %362 = vmatprep.subr.mxu0 0.0
        %363 = vmatpush2.msra.mxu0 0.0
        %364 = vmatprep.subr.mxu0 0.0
        %365 = vmatpush2.msra.mxu0 0.0
        %366 = vmatprep.subr.mxu0 0.0
        %367 = vmatpush2.msra.mxu0 0.0
        %368 = vmatprep.subr.mxu0 0.0
        %369 = vmatpush2.msra.mxu0 0.0
        %370 = vmatprep.subr.mxu0 0.0
        %371 = vmatpush2.msra.mxu0 0.0
        %372 = vmatprep.subr.mxu0 0.0
        %373 = vmatpush2.msra.mxu0 0.0
        %374 = vmatprep.subr.mxu0 0.0
        %375 = vmatpush2.msra.mxu0 0.0
        %376 = vmatprep.subr.mxu0 0.0
        %377 = vmatpush2.msra.mxu0 0.0
        %378 = vmatprep.subr.mxu0 0.0
        %379 = vmatpush2.msra.mxu0 0.0
        %380 = vmatprep.subr.mxu0 0.0
        %381 = vmatpush2.msra.mxu0 0.0
        %382 = vmatprep.subr.mxu0 0.0
        %383 = vmatpush2.msra.mxu0 0.0
        %384 = vmatprep.subr.mxu0 0.0
        %385 = vmatpush2.msra.mxu0 0.0
        %386 = vmatprep.subr.mxu0 0.0
        %387 = vmatpush2.msra.mxu0 0.0
        %388 = vmatprep.subr.mxu0 0.0
        %389 = vmatpush2.msra.mxu0 0.0
        %390 = vmatprep.subr.mxu0 0.0
        %391 = vmatpush2.msra.mxu0 0.0
        %392 = vmatprep.mubr.f32.mxu0 0.0
        %393 = vmatmul.mubr.f32.gmra.mxu0 %v326
        %v394 = vpop.f32.mrf.mxu0
        %v395 = vadd.f32 %v322, %v394
        %v396 = vpop.f32.mrf.mxu0
        %397 = vdwg.mxu0
        %v398 = vmax.f32 %v395, 0.0
        %v399 = vld [vmem:[%s3] sm:$0xff]
        %v400 = vld [vmem:[%s3 + $0x8] sm:$0xff]
        %v401 = vld [vmem:[%s3 + $0x10] sm:$0xff]
        %v402 = vld [vmem:[%s3 + $0x18] sm:$0xff]
        %v403 = vld [vmem:[%s3 + $0x20] sm:$0xff]
        %v404 = vld [vmem:[%s3 + $0x28] sm:$0xff]
        %v405 = vld [vmem:[%s3 + $0x30] sm:$0xff]
        %v406 = vld [vmem:[%s3 + $0x38] sm:$0xff]
        %v407 = vld [vmem:[%s3 + $0x40] sm:$0xff]
        %v408 = vld [vmem:[%s3 + $0x48] sm:$0xff]
        %v409 = vld [vmem:[%s3 + $0x50] sm:$0xff]
        %v410 = vld [vmem:[%s3 + $0x58] sm:$0xff]
        %v411 = vld [vmem:[%s3 + $0x60] sm:$0xff]
        %v412 = vld [vmem:[%s3 + $0x68] sm:$0xff]
        %v413 = vld [vmem:[%s3 + $0x70] sm:$0xff]
        %v414 = vld [vmem:[%s3 + $0x78] sm:$0xff]
        %v415 = vld [vmem:[%s4] sm:$0x1]
        %v417 = vlaneseq
        %v418 = vshrl.u32 %v417, 7
        %v419 = vsub.s32 0, %v418
        %v420 = vrot.slane %v415, %v419
        %422 = vmatprep.subr.mxu0 0.0
        %423 = vmatpush1.msra.mxu0 %v414
        %424 = vmatprep.subr.mxu0 0.0
        %425 = vmatpush1.msra.mxu0 %v413
        %426 = vmatprep.subr.mxu0 0.0
        %427 = vmatpush1.msra.mxu0 %v412
        %428 = vmatprep.subr.mxu0 0.0
        %429 = vmatpush1.msra.mxu0 %v411
        %430 = vmatprep.subr.mxu0 0.0
        %431 = vmatpush1.msra.mxu0 %v410
        %432 = vmatprep.subr.mxu0 0.0
        %433 = vmatpush1.msra.mxu0 %v409
        %434 = vmatprep.subr.mxu0 0.0
        %435 = vmatpush1.msra.mxu0 %v408
        %436 = vmatprep.subr.mxu0 0.0
        %437 = vmatpush1.msra.mxu0 %v407
        %438 = vmatprep.subr.mxu0 0.0
        %439 = vmatpush1.msra.mxu0 %v406
        %440 = vmatprep.subr.mxu0 0.0
        %441 = vmatpush1.msra.mxu0 %v405
        %442 = vmatprep.subr.mxu0 0.0
        %443 = vmatpush1.msra.mxu0 %v404
        %444 = vmatprep.subr.mxu0 0.0
        %445 = vmatpush1.msra.mxu0 %v403
        %446 = vmatprep.subr.mxu0 0.0
        %447 = vmatpush1.msra.mxu0 %v402
        %448 = vmatprep.subr.mxu0 0.0
        %449 = vmatpush1.msra.mxu0 %v401
        %450 = vmatprep.subr.mxu0 0.0
        %451 = vmatpush1.msra.mxu0 %v400
        %452 = vmatprep.subr.mxu0 0.0
        %453 = vmatpush1.msra.mxu0 %v399
        %454 = vmatprep.subr.mxu0 0.0
        %455 = vmatpush2.msra.mxu0 0.0
        %456 = vmatprep.subr.mxu0 0.0
        %457 = vmatpush2.msra.mxu0 0.0
        %458 = vmatprep.subr.mxu0 0.0
        %459 = vmatpush2.msra.mxu0 0.0
        %460 = vmatprep.subr.mxu0 0.0
        %461 = vmatpush2.msra.mxu0 0.0
        %462 = vmatprep.subr.mxu0 0.0
        %463 = vmatpush2.msra.mxu0 0.0
        %464 = vmatprep.subr.mxu0 0.0
        %465 = vmatpush2.msra.mxu0 0.0
        %466 = vmatprep.subr.mxu0 0.0
        %467 = vmatpush2.msra.mxu0 0.0
        %468 = vmatprep.subr.mxu0 0.0
        %469 = vmatpush2.msra.mxu0 0.0
        %470 = vmatprep.subr.mxu0 0.0
        %471 = vmatpush2.msra.mxu0 0.0
        %472 = vmatprep.subr.mxu0 0.0
        %473 = vmatpush2.msra.mxu0 0.0
        %474 = vmatprep.subr.mxu0 0.0
        %475 = vmatpush2.msra.mxu0 0.0
        %476 = vmatprep.subr.mxu0 0.0
        %477 = vmatpush2.msra.mxu0 0.0
        %478 = vmatprep.subr.mxu0 0.0
        %479 = vmatpush2.msra.mxu0 0.0
        %480 = vmatprep.subr.mxu0 0.0
        %481 = vmatpush2.msra.mxu0 0.0
        %482 = vmatprep.subr.mxu0 0.0
        %483 = vmatpush2.msra.mxu0 0.0
        %484 = vmatprep.subr.mxu0 0.0
        %485 = vmatpush2.msra.mxu0 0.0
        %486 = vmatprep.mubr.f32.mxu0 0.0
        %487 = vmatmul.mubr.f32.gmra.mxu0 %v398
        %v488 = vpop.f32.mrf.mxu0
        %v489 = vadd.f32 %v420, %v488
        %v490 = vpop.f32.mrf.mxu0
        %491 = vdwg.mxu0
        %vm492 = vcmask 64512
        %493 = vst.msk [vmem:[%s300] sm:$0xff] %vm492, %v489
        %v494 = vld [vmem:[%s5] sm:$0xff]
        %v495 = vld [vmem:[%s5 + $0x8] sm:$0xff]
        %v496 = vld [vmem:[%s5 + $0x10] sm:$0xff]
        %v497 = vld [vmem:[%s5 + $0x18] sm:$0xff]
        %v498 = vld [vmem:[%s5 + $0x20] sm:$0xff]
        %v499 = vld [vmem:[%s5 + $0x28] sm:$0xff]
        %v500 = vld [vmem:[%s5 + $0x30] sm:$0xff]
        %v501 = vld [vmem:[%s5 + $0x38] sm:$0xff]
        %v502 = vld [vmem:[%s5 + $0x40] sm:$0xff]
        %v503 = vld [vmem:[%s5 + $0x48] sm:$0xff]
        %v504 = vld [vmem:[%s5 + $0x50] sm:$0xff]
        %v505 = vld [vmem:[%s5 + $0x58] sm:$0xff]
        %v506 = vld [vmem:[%s5 + $0x60] sm:$0xff]
        %v507 = vld [vmem:[%s5 + $0x68] sm:$0xff]
        %v508 = vld [vmem:[%s5 + $0x70] sm:$0xff]
        %v509 = vld [vmem:[%s5 + $0x78] sm:$0xff]
        %v510 = vld [vmem:[%s6] sm:$0x1]
        %v512 = vlaneseq
        %v513 = vshrl.u32 %v512, 7
        %v514 = vsub.s32 0, %v513
        %v515 = vrot.slane %v510, %v514
        %517 = vmatprep.subr.mxu0 0.0
        %518 = vmatpush1.msra.mxu0 %v509
        %519 = vmatprep.subr.mxu0 0.0
        %520 = vmatpush1.msra.mxu0 %v508
        %521 = vmatprep.subr.mxu0 0.0
        %522 = vmatpush1.msra.mxu0 %v507
        %523 = vmatprep.subr.mxu0 0.0
        %524 = vmatpush1.msra.mxu0 %v506
        %525 = vmatprep.subr.mxu0 0.0
        %526 = vmatpush1.msra.mxu0 %v505
        %527 = vmatprep.subr.mxu0 0.0
        %528 = vmatpush1.msra.mxu0 %v504
        %529 = vmatprep.subr.mxu0 0.0
        %530 = vmatpush1.msra.mxu0 %v503
        %531 = vmatprep.subr.mxu0 0.0
        %532 = vmatpush1.msra.mxu0 %v502
        %533 = vmatprep.subr.mxu0 0.0
        %534 = vmatpush1.msra.mxu0 %v501
        %535 = vmatprep.subr.mxu0 0.0
        %536 = vmatpush1.msra.mxu0 %v500
        %537 = vmatprep.subr.mxu0 0.0
        %538 = vmatpush1.msra.mxu0 %v499
        %539 = vmatprep.subr.mxu0 0.0
        %540 = vmatpush1.msra.mxu0 %v498
        %541 = vmatprep.subr.mxu0 0.0
        %542 = vmatpush1.msra.mxu0 %v497
        %543 = vmatprep.subr.mxu0 0.0
        %544 = vmatpush1.msra.mxu0 %v496
        %545 = vmatprep.subr.mxu0 0.0
        %546 = vmatpush1.msra.mxu0 %v495
        %547 = vmatprep.subr.mxu0 0.0
        %548 = vmatpush1.msra.mxu0 %v494
        %549 = vmatprep.subr.mxu0 0.0
        %550 = vmatpush2.msra.mxu0 0.0
        %551 = vmatprep.subr.mxu0 0.0
        %552 = vmatpush2.msra.mxu0 0.0
        %553 = vmatprep.subr.mxu0 0.0
        %554 = vmatpush2.msra.mxu0 0.0
        %555 = vmatprep.subr.mxu0 0.0
        %556 = vmatpush2.msra.mxu0 0.0
        %557 = vmatprep.subr.mxu0 0.0
        %558 = vmatpush2.msra.mxu0 0.0
        %559 = vmatprep.subr.mxu0 0.0
        %560 = vmatpush2.msra.mxu0 0.0
        %561 = vmatprep.subr.mxu0 0.0
        %562 = vmatpush2.msra.mxu0 0.0
        %563 = vmatprep.subr.mxu0 0.0
        %564 = vmatpush2.msra.mxu0 0.0
        %565 = vmatprep.subr.mxu0 0.0
        %566 = vmatpush2.msra.mxu0 0.0
        %567 = vmatprep.subr.mxu0 0.0
        %568 = vmatpush2.msra.mxu0 0.0
        %569 = vmatprep.subr.mxu0 0.0
        %570 = vmatpush2.msra.mxu0 0.0
        %571 = vmatprep.subr.mxu0 0.0
        %572 = vmatpush2.msra.mxu0 0.0
        %573 = vmatprep.subr.mxu0 0.0
        %574 = vmatpush2.msra.mxu0 0.0
        %575 = vmatprep.subr.mxu0 0.0
        %576 = vmatpush2.msra.mxu0 0.0
        %577 = vmatprep.subr.mxu0 0.0
        %578 = vmatpush2.msra.mxu0 0.0
        %579 = vmatprep.subr.mxu0 0.0
        %580 = vmatpush2.msra.mxu0 0.0
        %581 = vmatprep.mubr.f32.mxu0 0.0
        %582 = vmatmul.mubr.f32.gmra.mxu0 %v398
        %v583 = vpop.f32.mrf.mxu0
        %v584 = vadd.f32 %v515, %v583
        %v585 = vpop.f32.mrf.mxu0
        %586 = vdwg.mxu0
        %587 = vst.msk [vmem:[%s307] sm:$0xff] %vm492, %v584
        %s588 = sand.u32 %s186, 1
        %s589 = scalar_lea.sflag [#allocation3], %s588
        %s590 = sand.u32 %s186, 1
        %s591 = smul.addr %s590, 8
        %s592 = scalar_lea.vmem [#allocation2], %s591
        %s593 = sand.u32 %s212, 1
        %s594 = scalar_lea.sflag [#allocation5], %s593
        %s595 = sand.u32 %s212, 1
        %s596 = smul.addr %s595, 8
        %s597 = scalar_lea.vmem [#allocation4], %s596
        // Predicated region
        $region49: #{sequence_label_for_grid.1} parent=47 // pred_check
          %p598 = pneg %p196
        $region50: #{sequence_label_for_grid.1} parent=47 // pred_check_branch
          %600 = sbr.rel (%p598) target = $region52
        $region51: #{sequence_label_for_grid.1} parent=47 // pred_region
          %s602 = ssub.s32 128, 128
          %603 = vsyncadd %s589, %s602
          %s604 = smul.addr %s26, 128
          %s605 = scalar_lea.hbm %s7, %s604
          %s607 = sshll.u32 %s592, 4
          %s608 = int_to_ptr.vmem [resolvable:$true] %s607
          %610 = dma.vmem_to_hbm [thread:$0]  %s608, 128, %s605, %s589
        $region52: #{sequence_label_for_grid.1} parent=47 // pred_fallthru
          _
        // Predicated region
        $region53: #{sequence_label_for_grid.1} parent=47 // pred_check
          %p611 = pneg %p222
        $region54: #{sequence_label_for_grid.1} parent=47 // pred_check_branch
          %613 = sbr.rel (%p611) target = $region56
        $region55: #{sequence_label_for_grid.1} parent=47 // pred_region
          %s615 = ssub.s32 128, 128
          %616 = vsyncadd %s594, %s615
          %s617 = smul.addr %s26, 128
          %s618 = scalar_lea.hbm %s8, %s617
          %s620 = sshll.u32 %s597, 4
          %s621 = int_to_ptr.vmem [resolvable:$true] %s620
          %623 = dma.vmem_to_hbm [thread:$0]  %s621, 128, %s618, %s594
        $region56: #{sequence_label_for_grid.1} parent=47 // pred_fallthru
          _
      $region48: #{sequence_label_for_grid.1} parent=5 // pred_fallthru
        _
      %p624 = scmp.le.s32.totalorder 2, %s21
      // Predicated region
      $region57: #{sequence_label_for_grid.1} parent=5 // pred_check
        %p625 = pneg %p624
      $region58: #{sequence_label_for_grid.1} parent=5 // pred_check_branch
        %627 = sbr.rel (%p625) target = $region60
      $region59: #{sequence_label_for_grid.1} parent=5 // pred_region
        %s628 = ssub.s32 %s21, 2
        // Predicated region
        $region61: #{sequence_label_for_grid.1} parent=59 // pred_check
          %p629 = pneg %p202
        $region62: #{sequence_label_for_grid.1} parent=59 // pred_check_branch
          %631 = sbr.rel (%p629) target = $region64
        $region63: #{sequence_label_for_grid.1} parent=59 // pred_region
          %s632 = sand.u32 %s187, 1
          %s633 = scalar_lea.sflag [#allocation3], %s632
          %s634 = sand.u32 %s187, 1
          %s635 = smul.addr %s634, 8
          %s636 = scalar_lea.vmem [#allocation2], %s635
          %637 = dma.done %s633, 128
        $region64: #{sequence_label_for_grid.1} parent=59 // pred_fallthru
          _
        // Predicated region
        $region65: #{sequence_label_for_grid.1} parent=59 // pred_check
          %p638 = pneg %p228
        $region66: #{sequence_label_for_grid.1} parent=59 // pred_check_branch
          %640 = sbr.rel (%p638) target = $region68
        $region67: #{sequence_label_for_grid.1} parent=59 // pred_region
          %s641 = sand.u32 %s213, 1
          %s642 = scalar_lea.sflag [#allocation5], %s641
          %s643 = sand.u32 %s213, 1
          %s644 = smul.addr %s643, 8
          %s645 = scalar_lea.vmem [#allocation4], %s644
          %646 = dma.done %s642, 128
        $region68: #{sequence_label_for_grid.1} parent=59 // pred_fallthru
          _
      $region60: #{sequence_label_for_grid.1} parent=5 // pred_fallthru
        _
    $region6: #{sequence_label_for_grid.1} parent=1 // loop_footer
      %s25 = sadd.s32 1, %s21
    $region7: #{sequence_label_for_grid.1} parent=1 // loop_footer_branch
      %20 = sbr.rel target = $region3
    $region8: #{sequence_label_for_grid.1} parent=1 // loop_exit
      _
    %647 = vsyncpa [#allocation3], 1
    %s648 = scalar_lea.sflag [#allocation3], 1
    %649 = vsyncpa %s648, 1
    %650 = vsyncpa [#allocation5], 1
    %s651 = scalar_lea.sflag [#allocation5], 1
    %652 = vsyncpa %s651, 1

</llo_original>
